<compile_context>
chip_gen: v5e
topology: v5e:2x2
jax: 0.10.0
libtpu: 0.0.40
codegen_flags: <defaults>
</compile_context>

<pallas_src>
import functools
import math

import jax
import jax.numpy as jnp
from jax import lax
from jax.experimental import pallas as pl
from jax.experimental.pallas import tpu as pltpu

_LANE = 128
# Conservative total-VMEM budget for the fast path (fits v7x's 32 MiB scoped default with
# headroom; v5e/v6e have more physical VMEM so this is safe everywhere).
_FAST_PATH_VMEM_BUDGET = 28 * 1024 * 1024


# ----------------------------------------------------------------------------------------
# Kernels
# ----------------------------------------------------------------------------------------
def _pos_emb_vmem_kernel(ids_ref, pe_ref, emb_ref, out_ref, rows_ref, *,
                         tile_s, pack, vocab, scale):
    """Fast path: embedding table resident in VMEM, in-VMEM row gather.

    ids_ref : SMEM (B, S) int32                 scalar-prefetched token ids
    pe_ref  : VMEM (tile_s//pack, pack*D)       lane-packed PE tile (reused across batch)
    emb_ref : VMEM (V, D)                       full table; constant index_map -> DMA'd once
    out_ref : VMEM (tile_s//pack, pack*D)       lane-packed output block (batch squeezed)
    rows_ref: VMEM scratch, shape of out_ref, emb dtype
    """
    st = pl.program_id(0)
    b = pl.program_id(1)
    rows_per_tile = tile_s // pack
    base = st * tile_s

    def gather(r, carry):
        # Build one lane-dense packed row from `pack` consecutive token embeddings.
        parts = []
        for jj in range(pack):                                   # static unroll
            tok = ids_ref[b, base + r * pack + jj]
            # torch.nn.Embedding raises on OOB ids; a TPU kernel cannot raise, so clamp.
            tok = jnp.minimum(jnp.maximum(tok, 0), vocab - 1)
            parts.append(emb_ref[pl.ds(tok, 1), :])              # (1, D) in-VMEM load
        row = parts[0] if pack == 1 else jnp.concatenate(parts, axis=1)
        rows_ref[pl.ds(r, 1), :] = row                           # full-width store
        return carry

    lax.fori_loop(0, rows_per_tile, gather, 0, unroll=min(8, rows_per_tile))

    # sqrt(d_model) * emb + pe  (lane-dense, f32 math, cast only at the store).
    out_ref[...] = (scale * rows_ref[...].astype(jnp.float32)
                    + pe_ref[...]).astype(out_ref.dtype)
    # TODO(synk): nn.Dropout treated as identity (eval mode); training-mode dropout would need
    # pltpu.prng_seed + pltpu.prng_random_bits masking here.


def _pos_emb_hbm_kernel(ids_ref, pe_ref, emb_hbm, out_ref, rows_ref, sem, *,
                        tile_s, vocab, scale):
    """Fallback for huge vocabularies: table stays in HBM, per-row DMA gather.

    All row copies share ONE DMA semaphore; each completion adds its byte count, so a single
    whole-tile wait descriptor (same total size) consumes them all at once.
    """
    st = pl.program_id(0)
    b = pl.program_id(1)
    base = st * tile_s

    def issue(j, carry):
        tok = ids_ref[b, base + j]
        tok = jnp.minimum(jnp.maximum(tok, 0), vocab - 1)
        pltpu.make_async_copy(emb_hbm.at[tok], rows_ref.at[j], sem).start()
        return carry

    lax.fori_loop(0, tile_s, issue, 0, unroll=8)

    # Aggregate wait: tile_s row copies of D elements each == one (tile_s, D) transfer.
    pltpu.make_async_copy(emb_hbm.at[pl.ds(0, tile_s)], rows_ref, sem).wait()
    # TODO(synk): cross-grid-step double buffering of the gather (2-slot rows/sem) would hide
    # the remaining DMA latency; omitted to keep the fallback simple.

    out_ref[...] = (scale * rows_ref[...].astype(jnp.float32)
                    + pe_ref[...]).astype(out_ref.dtype)


# ----------------------------------------------------------------------------------------
# Wrapper helpers
# ----------------------------------------------------------------------------------------
def make_pe(max_len: int, d_model: int) -> jnp.ndarray:
    """Sinusoidal positional encoding identical to the torch buffer `pe[0]`."""
    position = jnp.arange(max_len, dtype=jnp.float32)[:, None]                  # (L, 1)
    div_term = jnp.exp(jnp.arange(0, d_model, 2, dtype=jnp.float32)
                       * (-(math.log(10000.0) / d_model)))                      # (D/2,)
    ang = position * div_term                                                   # (L, D/2)
    # interleave: even columns = sin, odd columns = cos
    pe = jnp.stack([jnp.sin(ang), jnp.cos(ang)], axis=-1).reshape(max_len, d_model)
    return pe


def _pick_seq_tile(seq_len: int, per_row_bytes: int,
                   budget: int = 12 * 1024 * 1024) -> int:
    """Largest 'nice' divisor of S (mult of 8, <= 512) whose block working set fits."""
    for t in (512, 256, 128, 64, 32, 16, 8):
        if seq_len % t == 0 and t * per_row_bytes <= budget:
            return t
    return seq_len


def _pick_pack(d_model: int, tile_s: int, seq_len: int) -> int:
    """Lane-packing factor K: pack K token rows into one (K*D)-lane row when D < 128."""
    if d_model >= _LANE or _LANE % d_model != 0:
        return 1
    k = _LANE // d_model
    while k > 1:
        if (tile_s % k == 0 and seq_len % k == 0
                and ((tile_s // k) % 8 == 0 or tile_s == seq_len)):
            return k
        k //= 2
    return 1


def positional_embedding_forward(ids: jnp.ndarray,
                                 emb_table: jnp.ndarray,
                                 pe: jnp.ndarray,
                                 *, out_dtype=jnp.float32) -> jnp.ndarray:
    """ids: (B, S) int token indices -> (B, S, D) out_dtype.

    out_dtype=jnp.bfloat16 halves the dominant HBM output stream; math stays in f32.
    """
    B, S = ids.shape
    V, D = emb_table.shape
    scale = float(math.sqrt(D))
    emb_isize = emb_table.dtype.itemsize
    out_isize = jnp.dtype(out_dtype).itemsize

    # Per-token-row VMEM cost: double-buffered PE (f32) + double-buffered out + rows scratch.
    per_row = D * (2 * 4 + 2 * out_isize + emb_isize)
    tile_s = _pick_seq_tile(S, per_row)
    num_tiles = S // tile_s

    ids2d = ids.astype(jnp.int32)                         # 2-D SMEM scalar-prefetch operand
    pe_s = pe[:S].astype(jnp.float32)                     # (S, D)

    table_bytes = V * D * emb_isize
    blk_bytes = tile_s * per_row + (2 << 20)              # block working set + margin
    fast_need = 2 * table_bytes + blk_bytes               # count the resident table 2x (safe)
    use_vmem_table = fast_need <= _FAST_PATH_VMEM_BUDGET

    if use_vmem_table:
        # ---------------- fast path: VMEM-resident table, in-VMEM gather ----------------
        pack = _pick_pack(D, tile_s, S)
        rows_per_tile = tile_s // pack
        kd = pack * D
        kernel = functools.partial(_pos_emb_vmem_kernel, tile_s=tile_s, pack=pack,
                                   vocab=V, scale=scale)
        out = pl.pallas_call(
            kernel,
            out_shape=jax.ShapeDtypeStruct((B, S // pack, kd), out_dtype),
            grid_spec=pltpu.PrefetchScalarGridSpec(
                num_scalar_prefetch=1,
                grid=(num_tiles, B),   # batch innermost -> PE tile + table reused across batch
                in_specs=[
                    # Lane-packed PE tile; index_map ignores the batch axis.
                    pl.BlockSpec((rows_per_tile, kd), lambda st, b, ids: (st, 0)),
                    # Full table, constant index_map -> DMA'd to VMEM once, stays resident.
                    pl.BlockSpec((V, D), lambda st, b, ids: (0, 0)),
                ],
                out_specs=pl.BlockSpec((pl.Squeezed(), rows_per_tile, kd),
                                       lambda st, b, ids: (b, st, 0)),
                scratch_shapes=[pltpu.VMEM((rows_per_tile, kd), emb_table.dtype)],
            ),
            compiler_params=pltpu.CompilerParams(
                dimension_semantics=("parallel", "parallel"),
                vmem_limit_bytes=int(max(fast_need, 16 << 20)),
            ),
        )(ids2d, pe_s.reshape(S // pack, kd), emb_table)
        return out.reshape(B, S, D)

    # ---------------- fallback: huge vocab, table stays in HBM, per-row DMA gather -------
    assert V >= tile_s, "HBM-gather fallback assumes vocab >= seq tile"
    kernel = functools.partial(_pos_emb_hbm_kernel, tile_s=tile_s, vocab=V, scale=scale)
    out = pl.pallas_call(
        kernel,
        out_shape=jax.ShapeDtypeStruct((B, S, D), out_dtype),
        grid_spec=pltpu.PrefetchScalarGridSpec(
            num_scalar_prefetch=1,
            grid=(num_tiles, B),
            in_specs=[
                pl.BlockSpec((tile_s, D), lambda st, b, ids: (st, 0)),
                pl.BlockSpec(memory_space=pl.ANY),       # table never copied wholesale
            ],
            out_specs=pl.BlockSpec((pl.Squeezed(), tile_s, D),
                                   lambda st, b, ids: (b, st, 0)),
            scratch_shapes=[pltpu.VMEM((tile_s, D), emb_table.dtype),
                            pltpu.SemaphoreType.DMA(())],
        ),
        compiler_params=pltpu.CompilerParams(
            dimension_semantics=("parallel", "parallel"),
            vmem_limit_bytes=int(max(blk_bytes, 16 << 20)),
        ),
    )(ids2d, pe_s, emb_table)
    return out


# ----------------------------------------------------------------------------------------
# Self-test
# ----------------------------------------------------------------------------------------
if __name__ == "__main__":
    SRC_VOCAB = 64     # src_vocab
    D_MODEL = 32       # d_model
    MAX_LEN = 64       # max_len (small for the synthetic test)
    B, S = 2, 8        # batch, sequence length

    key = jax.random.PRNGKey(0)
    k_emb, k_ids = jax.random.split(key)

    # nn.Embedding default init: N(0, 1)
    emb_table = jax.random.normal(k_emb, (SRC_VOCAB, D_MODEL), dtype=jnp.float32)
    ids = jax.random.randint(k_ids, (B, S), 0, SRC_VOCAB, dtype=jnp.int32)
    pe = make_pe(MAX_LEN, D_MODEL)

    out = positional_embedding_forward(ids, emb_table, pe)
    out = jax.block_until_ready(out)

    # pure-JAX reference (same semantics as the torch forward in eval mode)
    ref = math.sqrt(D_MODEL) * jnp.take(emb_table, ids, axis=0) + pe[:S][None, :, :]
    assert out.shape == (B, S, D_MODEL)
    assert jnp.allclose(out, ref, atol=1e-4, rtol=1e-4), "mismatch vs reference"

    print("KERNEL_OK")
</pallas_src>

<mosaic_0001>
module attributes {stable_mosaic.version = 11 : i64} {
  func.func @_pos_emb_vmem_kernel(%arg0: i32, %arg1: i32, %arg2: memref<2x8xi32, #tpu.memory_space<smem>>, %arg3: memref<2x128xf32, #tpu.memory_space<vmem>>, %arg4: memref<64x32xf32, #tpu.memory_space<vmem>>, %arg5: memref<1x2x128xf32, #tpu.memory_space<vmem>>, %arg6: memref<2x128xf32, #tpu.memory_space<vmem>>) attributes {dimension_semantics = [#tpu.dimension_semantics<parallel>, #tpu.dimension_semantics<parallel>], iteration_bounds = array<i64: 1, 2>, scalar_prefetch = 1 : i64, scratch_operands = 1 : i64, tpu.core_type = #tpu.core_type<tc>, window_params = [{transform_indices = @transform_0, window_bounds = array<i64: 2, 128>}, {pipeline_mode = #tpu.pipeline_mode<synchronous>, transform_indices = @transform_1, window_bounds = array<i64: 64, 32>}, {transform_indices = @transform_2, window_bounds = array<i64: 1, 2, 128>}]} {
    %c8_i32 = arith.constant 8 : i32
    %0 = arith.muli %arg0, %c8_i32 : i32
    %c0_i32 = arith.constant 0 : i32
    %c4_i32 = arith.constant 4 : i32
    %1 = arith.muli %c0_i32, %c4_i32 : i32
    %2 = arith.addi %0, %1 : i32
    %c0_i32_0 = arith.constant 0 : i32
    %3 = arith.addi %2, %c0_i32_0 : i32
    %4 = arith.index_cast %arg1 : i32 to index
    %5 = arith.index_cast %3 : i32 to index
    %6 = memref.load %arg2[%4, %5] : memref<2x8xi32, #tpu.memory_space<smem>>
    %c0_i32_1 = arith.constant 0 : i32
    %7 = arith.maxsi %6, %c0_i32_1 : i32
    %c63_i32 = arith.constant 63 : i32
    %8 = arith.minsi %7, %c63_i32 : i32
    %9 = arith.index_cast %8 : i32 to index
    %c0 = arith.constant 0 : index
    %10 = vector.load %arg4[%9, %c0] : memref<64x32xf32, #tpu.memory_space<vmem>>, vector<1x32xf32>
    %c4_i32_2 = arith.constant 4 : i32
    %11 = arith.muli %c0_i32, %c4_i32_2 : i32
    %12 = arith.addi %0, %11 : i32
    %c1_i32 = arith.constant 1 : i32
    %13 = arith.addi %12, %c1_i32 : i32
    %14 = arith.index_cast %arg1 : i32 to index
    %15 = arith.index_cast %13 : i32 to index
    %16 = memref.load %arg2[%14, %15] : memref<2x8xi32, #tpu.memory_space<smem>>
    %c0_i32_3 = arith.constant 0 : i32
    %17 = arith.maxsi %16, %c0_i32_3 : i32
    %c63_i32_4 = arith.constant 63 : i32
    %18 = arith.minsi %17, %c63_i32_4 : i32
    %19 = arith.index_cast %18 : i32 to index
    %c0_5 = arith.constant 0 : index
    %20 = vector.load %arg4[%19, %c0_5] : memref<64x32xf32, #tpu.memory_space<vmem>>, vector<1x32xf32>
    %c4_i32_6 = arith.constant 4 : i32
    %21 = arith.muli %c0_i32, %c4_i32_6 : i32
    %22 = arith.addi %0, %21 : i32
    %c2_i32 = arith.constant 2 : i32
    %23 = arith.addi %22, %c2_i32 : i32
    %24 = arith.index_cast %arg1 : i32 to index
    %25 = arith.index_cast %23 : i32 to index
    %26 = memref.load %arg2[%24, %25] : memref<2x8xi32, #tpu.memory_space<smem>>
    %c0_i32_7 = arith.constant 0 : i32
    %27 = arith.maxsi %26, %c0_i32_7 : i32
    %c63_i32_8 = arith.constant 63 : i32
    %28 = arith.minsi %27, %c63_i32_8 : i32
    %29 = arith.index_cast %28 : i32 to index
    %c0_9 = arith.constant 0 : index
    %30 = vector.load %arg4[%29, %c0_9] : memref<64x32xf32, #tpu.memory_space<vmem>>, vector<1x32xf32>
    %c4_i32_10 = arith.constant 4 : i32
    %31 = arith.muli %c0_i32, %c4_i32_10 : i32
    %32 = arith.addi %0, %31 : i32
    %c3_i32 = arith.constant 3 : i32
    %33 = arith.addi %32, %c3_i32 : i32
    %34 = arith.index_cast %arg1 : i32 to index
    %35 = arith.index_cast %33 : i32 to index
    %36 = memref.load %arg2[%34, %35] : memref<2x8xi32, #tpu.memory_space<smem>>
    %c0_i32_11 = arith.constant 0 : i32
    %37 = arith.maxsi %36, %c0_i32_11 : i32
    %c63_i32_12 = arith.constant 63 : i32
    %38 = arith.minsi %37, %c63_i32_12 : i32
    %39 = arith.index_cast %38 : i32 to index
    %c0_13 = arith.constant 0 : index
    %40 = vector.load %arg4[%39, %c0_13] : memref<64x32xf32, #tpu.memory_space<vmem>>, vector<1x32xf32>
    %41 = tpu.concatenate %10, %20, %30, %40 in 1 : vector<1x32xf32>, vector<1x32xf32>, vector<1x32xf32>, vector<1x32xf32> -> vector<1x128xf32>
    %42 = arith.index_cast %c0_i32 : i32 to index
    %c0_14 = arith.constant 0 : index
    %43 = vector.load %arg6[%42, %c0_14] : memref<2x128xf32, #tpu.memory_space<vmem>>, vector<1x128xf32>
    tpu.vector_store %arg6[%42, %c0_14], %41 {strides = array<i32>} : memref<2x128xf32, #tpu.memory_space<vmem>>, vector<1x128xf32>,
    %c1_i32_15 = arith.constant 1 : i32
    %c4_i32_16 = arith.constant 4 : i32
    %44 = arith.muli %c1_i32_15, %c4_i32_16 : i32
    %45 = arith.addi %0, %44 : i32
    %c0_i32_17 = arith.constant 0 : i32
    %46 = arith.addi %45, %c0_i32_17 : i32
    %47 = arith.index_cast %arg1 : i32 to index
    %48 = arith.index_cast %46 : i32 to index
    %49 = memref.load %arg2[%47, %48] : memref<2x8xi32, #tpu.memory_space<smem>>
    %c0_i32_18 = arith.constant 0 : i32
    %50 = arith.maxsi %49, %c0_i32_18 : i32
    %c63_i32_19 = arith.constant 63 : i32
    %51 = arith.minsi %50, %c63_i32_19 : i32
    %52 = arith.index_cast %51 : i32 to index
    %c0_20 = arith.constant 0 : index
    %53 = vector.load %arg4[%52, %c0_20] : memref<64x32xf32, #tpu.memory_space<vmem>>, vector<1x32xf32>
    %c4_i32_21 = arith.constant 4 : i32
    %54 = arith.muli %c1_i32_15, %c4_i32_21 : i32
    %55 = arith.addi %0, %54 : i32
    %c1_i32_22 = arith.constant 1 : i32
    %56 = arith.addi %55, %c1_i32_22 : i32
    %57 = arith.index_cast %arg1 : i32 to index
    %58 = arith.index_cast %56 : i32 to index
    %59 = memref.load %arg2[%57, %58] : memref<2x8xi32, #tpu.memory_space<smem>>
    %c0_i32_23 = arith.constant 0 : i32
    %60 = arith.maxsi %59, %c0_i32_23 : i32
    %c63_i32_24 = arith.constant 63 : i32
    %61 = arith.minsi %60, %c63_i32_24 : i32
    %62 = arith.index_cast %61 : i32 to index
    %c0_25 = arith.constant 0 : index
    %63 = vector.load %arg4[%62, %c0_25] : memref<64x32xf32, #tpu.memory_space<vmem>>, vector<1x32xf32>
    %c4_i32_26 = arith.constant 4 : i32
    %64 = arith.muli %c1_i32_15, %c4_i32_26 : i32
    %65 = arith.addi %0, %64 : i32
    %c2_i32_27 = arith.constant 2 : i32
    %66 = arith.addi %65, %c2_i32_27 : i32
    %67 = arith.index_cast %arg1 : i32 to index
    %68 = arith.index_cast %66 : i32 to index
    %69 = memref.load %arg2[%67, %68] : memref<2x8xi32, #tpu.memory_space<smem>>
    %c0_i32_28 = arith.constant 0 : i32
    %70 = arith.maxsi %69, %c0_i32_28 : i32
    %c63_i32_29 = arith.constant 63 : i32
    %71 = arith.minsi %70, %c63_i32_29 : i32
    %72 = arith.index_cast %71 : i32 to index
    %c0_30 = arith.constant 0 : index
    %73 = vector.load %arg4[%72, %c0_30] : memref<64x32xf32, #tpu.memory_space<vmem>>, vector<1x32xf32>
    %c4_i32_31 = arith.constant 4 : i32
    %74 = arith.muli %c1_i32_15, %c4_i32_31 : i32
    %75 = arith.addi %0, %74 : i32
    %c3_i32_32 = arith.constant 3 : i32
    %76 = arith.addi %75, %c3_i32_32 : i32
    %77 = arith.index_cast %arg1 : i32 to index
    %78 = arith.index_cast %76 : i32 to index
    %79 = memref.load %arg2[%77, %78] : memref<2x8xi32, #tpu.memory_space<smem>>
    %c0_i32_33 = arith.constant 0 : i32
    %80 = arith.maxsi %79, %c0_i32_33 : i32
    %c63_i32_34 = arith.constant 63 : i32
    %81 = arith.minsi %80, %c63_i32_34 : i32
    %82 = arith.index_cast %81 : i32 to index
    %c0_35 = arith.constant 0 : index
    %83 = vector.load %arg4[%82, %c0_35] : memref<64x32xf32, #tpu.memory_space<vmem>>, vector<1x32xf32>
    %84 = tpu.concatenate %53, %63, %73, %83 in 1 : vector<1x32xf32>, vector<1x32xf32>, vector<1x32xf32>, vector<1x32xf32> -> vector<1x128xf32>
    %85 = arith.index_cast %c1_i32_15 : i32 to index
    %c0_36 = arith.constant 0 : index
    %86 = vector.load %arg6[%85, %c0_36] : memref<2x128xf32, #tpu.memory_space<vmem>>, vector<1x128xf32>
    tpu.vector_store %arg6[%85, %c0_36], %84 {strides = array<i32>} : memref<2x128xf32, #tpu.memory_space<vmem>>, vector<1x128xf32>,
    %c2_i32_37 = arith.constant 2 : i32
    %c0_38 = arith.constant 0 : index
    %c0_39 = arith.constant 0 : index
    %87 = vector.load %arg6[%c0_38, %c0_39] : memref<2x128xf32, #tpu.memory_space<vmem>>, vector<2x128xf32>
    %cst = arith.constant 5.65685415 : f32
    %88 = vector.broadcast %cst : f32 to vector<2x128xf32>
    %89 = arith.mulf %88, %87 : vector<2x128xf32>
    %c0_40 = arith.constant 0 : index
    %c0_41 = arith.constant 0 : index
    %90 = vector.load %arg3[%c0_40, %c0_41] : memref<2x128xf32, #tpu.memory_space<vmem>>, vector<2x128xf32>
    %91 = arith.addf %89, %90 : vector<2x128xf32>
    %c0_42 = arith.constant 0 : index
    %c0_43 = arith.constant 0 : index
    %c0_44 = arith.constant 0 : index
    %92 = vector.load %arg5[%c0_42, %c0_43, %c0_44] : memref<1x2x128xf32, #tpu.memory_space<vmem>>, vector<1x2x128xf32>
    %93 = vector.shape_cast %92 : vector<1x2x128xf32> to vector<2x128xf32>
    %94 = vector.shape_cast %91 : vector<2x128xf32> to vector<1x2x128xf32>
    tpu.vector_store %arg5[%c0_42, %c0_43, %c0_44], %94 {strides = array<i32>} : memref<1x2x128xf32, #tpu.memory_space<vmem>>, vector<1x2x128xf32>,
    return
  }
  func.func @transform_0(%arg0: i32, %arg1: i32, %arg2: memref<2x8xi32, #tpu.memory_space<smem>>) -> (i32, i32) {
    %c0_i32 = arith.constant 0 : i32
    %c0_i32_0 = arith.constant 0 : i32
    return %arg0, %c0_i32 : i32, i32
  }
  func.func @transform_1(%arg0: i32, %arg1: i32, %arg2: memref<2x8xi32, #tpu.memory_space<smem>>) -> (i32, i32) {
    %c0_i32 = arith.constant 0 : i32
    %c0_i32_0 = arith.constant 0 : i32
    %c0_i32_1 = arith.constant 0 : i32
    return %c0_i32, %c0_i32_0 : i32, i32
  }
  func.func @transform_2(%arg0: i32, %arg1: i32, %arg2: memref<2x8xi32, #tpu.memory_space<smem>>) -> (i32, i32, i32) {
    %c0_i32 = arith.constant 0 : i32
    %c0_i32_0 = arith.constant 0 : i32
    return %arg1, %arg0, %c0_i32 : i32, i32, i32
  }
}

</mosaic_0001>

<llo_original>
// kernel: tpu_custom_call.1
$region0: #{tpu_custom_call.1}
  #allocation0 [shape = 'u32[]', space=smem, size = 0x4, offset = 0x4, fixed_abs, tag = 'smem constant byte address 0x4 - core index']
  #allocation1 [shape = 'u32[72,128]{1,0:T(1,128)}', space=vmem, size = 0x9000, scoped, tag = 'internal scratch']
  #allocation2 [shape = 'f32[2,128]{1,0:T(2,128)}', space=vmem, size = 0x400, scoped, tag = 'scratch operand']
  #allocation3 [shape = 's32[1]{0}', space=sflag, size = 0x4, scoped, tag = 'scoped memory for tpu_custom_call.1']
  #allocation4 [shape = 'u8[1024]{0}', space=smem, size = 0x400, scoped, tag = 'prefetched SMEM operand 0']
  %s0 = inlined_call_operand.vmem [shape: s32[2,8], index: 0, kind: input, shape index: {}]
  %s1 = inlined_call_operand.vmem [shape: f32[2,128], index: 1, kind: input, shape index: {}]
  %s2 = inlined_call_operand.vmem [shape: f32[64,32], index: 2, kind: input, shape index: {}]
  %s3 = inlined_call_operand.hbm [shape: f32[2,2,128], index: 3, kind: output, shape index: {}]
  %s4 = sld [smem:[#allocation0]]
  $region41: #{tpu_custom_call.1} parent=0
    _
  %s6 = ssub.s32 1, %s4
  %s7 = scalar_select 0, %s6, %s4
  %s9 = sshll.u32 %s0, 4
  %s10 = int_to_ptr.vmem [resolvable:$true] %s9
  %12 = dma.vmem_to_smem %s10, 32, [#allocation4], [#allocation3]
  %14 = dma.done [#allocation3], 32
  %15 = sfence
  $region1: #{tpu_custom_call.1} parent=0
    #allocation5 [shape = 'u8[2048]{0}', space=vmem, size = 0x800, scoped, tag = 'output window, operand 0']
    #allocation6 [shape = 's32[2]{0}', space=sflag, size = 0x8, scoped, tag = 'scoped memory for tpu_custom_call.1']
    %16 = vsyncpa [#allocation6], 0
    %s17 = scalar_lea.sflag [#allocation6], 1
    %18 = vsyncpa %s17, 0
    loop: start=0, step=1, limit=4
    $region2: #{tpu_custom_call.1} parent=1 // loop_pre_header
      _
    $region3: #{tpu_custom_call.1} parent=1 // loop_header
      %s20 = sphi 0, %s24
      %p21 = scmp.ge.s32.totalorder %s20, 4
      %s27 = sphi 0, %s39
      %s28 = sphi 0, %s35
      %s29 = sphi 0, %s27
      %s30 = sphi 0, %s28
      %s31 = sphi 0, %s29
      %s32 = sphi 0, %s30
      %s42 = sphi 0, %s44
      %s45 = sphi 0, %s42
      %s46 = sphi 0, %s45
      %s62 = sphi 0, %s46
      %s66 = sphi 0, %s66
      %s68 = sphi 0, %s66
      %s69 = sphi 0, %s68
      %s83 = sphi 0, %s69
      %s91 = sphi 0, %s93
      %s94 = sphi 0, %s91
      %s95 = sphi 0, %s94
      %s111 = sphi 0, %s95
    $region4: #{tpu_custom_call.1} parent=1 // loop_header_branch
      %23 = sbr.rel (%p21) target = $region8
    $region5: #{tpu_custom_call.1} parent=1 // loop_body
      %s25 = ssub.s32 %s20, 1
      %s26 = ssub.s32 %s20, 2
      %s33 = sadd.s32 1, %s28
      %p34 = scmp.ge.s32.totalorder %s33, 2
      %s35 = scalar_select %p34, 0, %s33
      %s36 = sadd.s32 1, %s27
      %s37 = scalar_select %p34, %s36, %s27
      %p38 = scmp.ge.s32.totalorder %s37, 1
      %s39 = scalar_select %p38, 0, %s37
      %s40 = ssub.s32 %s27, %s39
      %p41 = scmp.eq.s32.totalorder %s40, 0
      %s43 = sadd.s32 %s42, 1
      %s44 = scalar_select %p41, %s42, %s43
      %p47 = pneg %p41
      %p48 = scmp.eq.s32.totalorder %s20, 1
      %p49 = por %p47, %p48
      %p50 = scmp.ne.s32.totalorder %s42, %s45
      %p51 = scmp.eq.s32.totalorder %s20, 0
      %p52 = por %p50, %p51
      %p53 = scmp.ne.s32.totalorder %s42, %s45
      %p54 = scmp.eq.s32.totalorder %s25, 1
      %p55 = por %p53, %p54
      %p56 = scmp.ne.s32.totalorder %s45, %s46
      %p57 = scmp.eq.s32.totalorder %s25, 0
      %p58 = por %p56, %p57
      %p59 = scmp.ne.s32.totalorder %s45, %s46
      %p60 = scmp.eq.s32.totalorder %s26, 1
      %p61 = por %p59, %p60
      %p63 = scmp.ne.s32.totalorder %s46, %s62
      %p64 = scmp.eq.s32.totalorder %s26, 0
      %p65 = por %p63, %p64
      %s67 = sadd.s32 %s66, 1
      %p70 = scmp.eq.s32.totalorder %s20, 1
      %p71 = scmp.ne.s32.totalorder %s66, %s68
      %p72 = scmp.eq.s32.totalorder %s20, 0
      %p73 = por %p71, %p72
      %p74 = scmp.ne.s32.totalorder %s66, %s68
      %p75 = scmp.eq.s32.totalorder %s25, 1
      %p76 = por %p74, %p75
      %p77 = scmp.ne.s32.totalorder %s68, %s69
      %p78 = scmp.eq.s32.totalorder %s25, 0
      %p79 = por %p77, %p78
      %p80 = scmp.ne.s32.totalorder %s68, %s69
      %p81 = scmp.eq.s32.totalorder %s26, 1
      %p82 = por %p80, %p81
      %p84 = scmp.ne.s32.totalorder %s69, %s83
      %p85 = scmp.eq.s32.totalorder %s26, 0
      %p86 = por %p84, %p85
      %s87 = ssub.s32 %s28, %s35
      %s88 = ssub.s32 %s27, %s39
      %s89 = sor.u32 %s87, %s88
      %p90 = scmp.eq.s32.totalorder %s89, 0
      %s92 = sadd.s32 %s91, 1
      %s93 = scalar_select %p90, %s91, %s92
      %p96 = pneg %p90
      %p97 = scmp.eq.s32.totalorder %s20, 1
      %p98 = por %p96, %p97
      %p99 = scmp.ne.s32.totalorder %s91, %s94
      %p100 = scmp.eq.s32.totalorder %s20, 0
      %p101 = por %p99, %p100
      %p102 = scmp.ne.s32.totalorder %s91, %s94
      %p103 = scmp.eq.s32.totalorder %s25, 1
      %p104 = por %p102, %p103
      %p105 = scmp.ne.s32.totalorder %s94, %s95
      %p106 = scmp.eq.s32.totalorder %s25, 0
      %p107 = por %p105, %p106
      %p108 = scmp.ne.s32.totalorder %s94, %s95
      %p109 = scmp.eq.s32.totalorder %s26, 1
      %p110 = por %p108, %p109
      %p112 = scmp.ne.s32.totalorder %s95, %s111
      %p113 = scmp.eq.s32.totalorder %s26, 0
      %p114 = por %p112, %p113
      %p115 = scmp.le.s32.totalorder 1, %s20
      %p116 = scmp.lt.s32.totalorder %s20, 3
      %p117 = pnand %p115, %p116
      %p118 = pneg %p117
      // Predicated region
      $region9: #{tpu_custom_call.1} parent=5 // pred_check
        _
      $region10: #{tpu_custom_call.1} parent=5 // pred_check_branch
        %120 = sbr.rel (%p117) target = $region12
      $region11: #{tpu_custom_call.1} parent=5 // pred_region
        %s121 = ssub.s32 %s20, 1
        // Predicated region
        $region13: #{tpu_custom_call.1} parent=11 // pred_check
          %p122 = pneg %p58
        $region14: #{tpu_custom_call.1} parent=11 // pred_check_branch
          %124 = sbr.rel (%p122) target = $region16
        $region15: #{tpu_custom_call.1} parent=11 // pred_region
          %p125 = scmp.lt.s32.totalorder %s29, 0
          %s126 = scalar_select %p125, %s29, 0
          %s127 = smul.addr %s126, 2
          %s128 = scalar_lea.vmem %s1, %s127
        $region16: #{tpu_custom_call.1} parent=11 // pred_fallthru
          _
        // Predicated region
        $region17: #{tpu_custom_call.1} parent=11 // pred_check
          %p129 = pneg %p79
        $region18: #{tpu_custom_call.1} parent=11 // pred_check_branch
          %131 = sbr.rel (%p129) target = $region20
        $region19: #{tpu_custom_call.1} parent=11 // pred_region
          _
        $region20: #{tpu_custom_call.1} parent=11 // pred_fallthru
          _
      $region12: #{tpu_custom_call.1} parent=5 // pred_fallthru
        _
      %p132 = scmp.lt.s32.totalorder %s20, 2
      // Predicated region
      $region21: #{tpu_custom_call.1} parent=5 // pred_check
        %p133 = pneg %p132
      $region22: #{tpu_custom_call.1} parent=5 // pred_check_branch
        %135 = sbr.rel (%p133) target = $region24
      $region23: #{tpu_custom_call.1} parent=5 // pred_region
        _
      $region24: #{tpu_custom_call.1} parent=5 // pred_fallthru
        _
      %p136 = scmp.le.s32.totalorder 1, %s20
      %p137 = scmp.lt.s32.totalorder %s20, 3
      %p138 = pnand %p136, %p137
      %p139 = pneg %p138
      // Predicated region
      $region25: #{tpu_custom_call.1} parent=5 // pred_check
        _
      $region26: #{tpu_custom_call.1} parent=5 // pred_check_branch
        %141 = sbr.rel (%p138) target = $region28
      $region27: #{tpu_custom_call.1} parent=5 // pred_region
        %s142 = ssub.s32 %s20, 1
        %p143 = scmp.lt.s32.totalorder %s29, 0
        %s144 = scalar_select %p143, %s29, 0
        %s145 = smul.addr %s144, 2
        %s146 = scalar_lea.vmem %s1, %s145
        %p147 = pneg %p58
        %p148 = pneg %p55
        %p149 = pneg %p79
        %p150 = pneg %p76
        %p151 = pneg %p107
        %p152 = pneg %p104
        %s153 = sand.u32 %s94, 1
        %s154 = scalar_lea.sflag [#allocation6], %s153
        %s155 = sand.u32 %s94, 1
        %s156 = smul.addr %s155, 2
        %s157 = scalar_lea.vmem [#allocation5], %s156
        %p158 = scmp.lt.s32.totalorder %s29, 0
        %s159 = scalar_select %p158, %s29, 0
        %s160 = smul.addr %s159, 2
        %s161 = scalar_lea.vmem %s1, %s160
        %s162 = smul.u32 %s29, 8
        %s163 = sshra.s32 %s162, 7
        %s164 = sand.u32 %s162, 127
        %s165 = sadd.s32 %s163, %s30
        %s166 = smul.u32 %s165, 128
        %s167 = sshra.s32 %s162, 7
        %s168 = sand.u32 %s162, 127
        %s169 = sadd.s32 %s166, %s168
        %s170 = sld [smem:[#allocation4 + %s169]]
        %p171 = scmp.gt.s32.totalorder %s170, 0
        %s172 = scalar_select %p171, %s170, 0
        %p173 = scmp.lt.s32.totalorder %s172, 63
        %s174 = scalar_select %p173, %s172, 63
        %s175 = scalar_lea.vmem %s2, %s174
        %v176 = vld [vmem:[%s175] sm:$0x1]
        %s177 = sadd.s32 %s162, 1
        %s178 = sshra.s32 %s177, 7
        %s179 = sand.u32 %s177, 127
        %s180 = sadd.s32 %s178, %s30
        %s181 = smul.u32 %s180, 128
        %s182 = sshra.s32 %s177, 7
        %s183 = sand.u32 %s177, 127
        %s184 = sadd.s32 %s181, %s183
        %s185 = sld [smem:[#allocation4 + %s184]]
        %p186 = scmp.gt.s32.totalorder %s185, 0
        %s187 = scalar_select %p186, %s185, 0
        %p188 = scmp.lt.s32.totalorder %s187, 63
        %s189 = scalar_select %p188, %s187, 63
        %s190 = scalar_lea.vmem %s2, %s189
        %v191 = vld [vmem:[%s190] sm:$0x1]
        %s192 = sadd.s32 %s162, 2
        %s193 = sshra.s32 %s192, 7
        %s194 = sand.u32 %s192, 127
        %s195 = sadd.s32 %s193, %s30
        %s196 = smul.u32 %s195, 128
        %s197 = sshra.s32 %s192, 7
        %s198 = sand.u32 %s192, 127
        %s199 = sadd.s32 %s196, %s198
        %s200 = sld [smem:[#allocation4 + %s199]]
        %p201 = scmp.gt.s32.totalorder %s200, 0
        %s202 = scalar_select %p201, %s200, 0
        %p203 = scmp.lt.s32.totalorder %s202, 63
        %s204 = scalar_select %p203, %s202, 63
        %s205 = scalar_lea.vmem %s2, %s204
        %v206 = vld [vmem:[%s205] sm:$0x1]
        %s207 = sadd.s32 %s162, 3
        %s208 = sshra.s32 %s207, 7
        %s209 = sand.u32 %s207, 127
        %s210 = sadd.s32 %s208, %s30
        %s211 = smul.u32 %s210, 128
        %s212 = sshra.s32 %s207, 7
        %s213 = sand.u32 %s207, 127
        %s214 = sadd.s32 %s211, %s213
        %s215 = sld [smem:[#allocation4 + %s214]]
        %p216 = scmp.gt.s32.totalorder %s215, 0
        %s217 = scalar_select %p216, %s215, 0
        %p218 = scmp.lt.s32.totalorder %s217, 63
        %s219 = scalar_select %p218, %s217, 63
        %s220 = scalar_lea.vmem %s2, %s219
        %v221 = vld [vmem:[%s220] sm:$0x1]
        %223 = vrot.lane.b32.xlu0 %v191, 32
        %v224 = vpop.permute.xlu0 %223
        %227 = vrot.lane.b32.xlu0 %v206, 64
        %v228 = vpop.permute.xlu0 %227
        %231 = vrot.lane.b32.xlu0 %v221, 96
        %v232 = vpop.permute.xlu0 %231
        %vm234 = vcmask 261120
        %v235 = vsel %vm234, %v176, %v224
        %vm236 = vcmask 523264
        %v237 = vsel %vm236, %v235, %v228
        %vm238 = vcmask 785408
        %v239 = vsel %vm238, %v237, %v232
        %240 = vst [vmem:[#allocation2] sm:$0x1] %v239
        %s241 = sadd.s32 %s162, 4
        %s242 = sshra.s32 %s241, 7
        %s243 = sand.u32 %s241, 127
        %s244 = sadd.s32 %s242, %s30
        %s245 = smul.u32 %s244, 128
        %s246 = sshra.s32 %s241, 7
        %s247 = sand.u32 %s241, 127
        %s248 = sadd.s32 %s245, %s247
        %s249 = sld [smem:[#allocation4 + %s248]]
        %p250 = scmp.gt.s32.totalorder %s249, 0
        %s251 = scalar_select %p250, %s249, 0
        %p252 = scmp.lt.s32.totalorder %s251, 63
        %s253 = scalar_select %p252, %s251, 63
        %s254 = scalar_lea.vmem %s2, %s253
        %v255 = vld [vmem:[%s254] sm:$0x1]
        %s256 = sadd.s32 %s162, 5
        %s257 = sshra.s32 %s256, 7
        %s258 = sand.u32 %s256, 127
        %s259 = sadd.s32 %s257, %s30
        %s260 = smul.u32 %s259, 128
        %s261 = sshra.s32 %s256, 7
        %s262 = sand.u32 %s256, 127
        %s263 = sadd.s32 %s260, %s262
        %s264 = sld [smem:[#allocation4 + %s263]]
        %p265 = scmp.gt.s32.totalorder %s264, 0
        %s266 = scalar_select %p265, %s264, 0
        %p267 = scmp.lt.s32.totalorder %s266, 63
        %s268 = scalar_select %p267, %s266, 63
        %s269 = scalar_lea.vmem %s2, %s268
        %v270 = vld [vmem:[%s269] sm:$0x1]
        %s271 = sadd.s32 %s162, 6
        %s272 = sshra.s32 %s271, 7
        %s273 = sand.u32 %s271, 127
        %s274 = sadd.s32 %s272, %s30
        %s275 = smul.u32 %s274, 128
        %s276 = sshra.s32 %s271, 7
        %s277 = sand.u32 %s271, 127
        %s278 = sadd.s32 %s275, %s277
        %s279 = sld [smem:[#allocation4 + %s278]]
        %p280 = scmp.gt.s32.totalorder %s279, 0
        %s281 = scalar_select %p280, %s279, 0
        %p282 = scmp.lt.s32.totalorder %s281, 63
        %s283 = scalar_select %p282, %s281, 63
        %s284 = scalar_lea.vmem %s2, %s283
        %v285 = vld [vmem:[%s284] sm:$0x1]
        %s286 = sadd.s32 %s162, 7
        %s287 = sshra.s32 %s286, 7
        %s288 = sand.u32 %s286, 127
        %s289 = sadd.s32 %s287, %s30
        %s290 = smul.u32 %s289, 128
        %s291 = sshra.s32 %s286, 7
        %s292 = sand.u32 %s286, 127
        %s293 = sadd.s32 %s290, %s292
        %s294 = sld [smem:[#allocation4 + %s293]]
        %p295 = scmp.gt.s32.totalorder %s294, 0
        %s296 = scalar_select %p295, %s294, 0
        %p297 = scmp.lt.s32.totalorder %s296, 63
        %s298 = scalar_select %p297, %s296, 63
        %s299 = scalar_lea.vmem %s2, %s298
        %v300 = vld [vmem:[%s299] sm:$0x1]
        %302 = vrot.lane.b32.xlu0 %v270, 32
        %v303 = vpop.permute.xlu0 %302
        %306 = vrot.lane.b32.xlu0 %v285, 64
        %v307 = vpop.permute.xlu0 %306
        %310 = vrot.lane.b32.xlu0 %v300, 96
        %v311 = vpop.permute.xlu0 %310
        %v313 = vsel %vm234, %v255, %v303
        %v314 = vsel %vm236, %v313, %v307
        %v315 = vsel %vm238, %v314, %v311
        %316 = vst [vmem:[#allocation2 + $0x1] sm:$0x1] %v315
        %v317 = vld [vmem:[#allocation2] sm:$0x3]
        %v318 = vmul.f32 %v317, 5.656854
        %v319 = vld [vmem:[%s161] sm:$0x3]
        %v320 = vadd.f32 %v318, %v319
        %321 = vst [vmem:[%s157] sm:$0x3] %v320
        %s322 = sand.u32 %s94, 1
        %s323 = scalar_lea.sflag [#allocation6], %s322
        %s324 = sand.u32 %s94, 1
        %s325 = smul.addr %s324, 2
        %s326 = scalar_lea.vmem [#allocation5], %s325
        // Predicated region
        $region29: #{tpu_custom_call.1} parent=27 // pred_check
          %p327 = pneg %p104
        $region30: #{tpu_custom_call.1} parent=27 // pred_check_branch
          %329 = sbr.rel (%p327) target = $region32
        $region31: #{tpu_custom_call.1} parent=27 // pred_region
          %331 = vsyncadd %s323, 0
          %s332 = sadd.s32 %s29, %s30
          %s333 = smul.addr %s332, 2
          %s334 = scalar_lea.hbm %s3, %s333
          %s336 = sshll.u32 %s326, 4
          %s337 = int_to_ptr.vmem [resolvable:$true] %s336
          %s338 = sshll.u32 %s334, 4
          %s339 = int_to_ptr.hbm [resolvable:$true] %s338
          %341 = dma.vmem_to_hbm [thread:$0]  %s337, 32, %s339, %s323
        $region32: #{tpu_custom_call.1} parent=27 // pred_fallthru
          _
      $region28: #{tpu_custom_call.1} parent=5 // pred_fallthru
        _
      %p342 = scmp.le.s32.totalorder 2, %s20
      // Predicated region
      $region33: #{tpu_custom_call.1} parent=5 // pred_check
        %p343 = pneg %p342
      $region34: #{tpu_custom_call.1} parent=5 // pred_check_branch
        %345 = sbr.rel (%p343) target = $region36
      $region35: #{tpu_custom_call.1} parent=5 // pred_region
        %s346 = ssub.s32 %s20, 2
        // Predicated region
        $region37: #{tpu_custom_call.1} parent=35 // pred_check
          %p347 = pneg %p110
        $region38: #{tpu_custom_call.1} parent=35 // pred_check_branch
          %349 = sbr.rel (%p347) target = $region40
        $region39: #{tpu_custom_call.1} parent=35 // pred_region
          %s350 = sand.u32 %s95, 1
          %s351 = scalar_lea.sflag [#allocation6], %s350
          %s352 = sand.u32 %s95, 1
          %s353 = smul.addr %s352, 2
          %s354 = scalar_lea.vmem [#allocation5], %s353
          %356 = dma.done %s351, 32
        $region40: #{tpu_custom_call.1} parent=35 // pred_fallthru
          _
      $region36: #{tpu_custom_call.1} parent=5 // pred_fallthru
        _
    $region6: #{tpu_custom_call.1} parent=1 // loop_footer
      %s24 = sadd.s32 1, %s20
    $region7: #{tpu_custom_call.1} parent=1 // loop_footer_branch
      %19 = sbr.rel target = $region3
    $region8: #{tpu_custom_call.1} parent=1 // loop_exit
      _
    %357 = vsyncpa [#allocation6], 1
    %s358 = scalar_lea.sflag [#allocation6], 1
    %359 = vsyncpa %s358, 1

</llo_original>
